<compile_context>
chip_gen: v7x
topology: tpu7x:2x2x1
jax: 0.10.0
libtpu: 0.0.40
codegen_flags: <defaults>
</compile_context>

<pallas_src>
import jax
import jax.numpy as jnp
from jax.experimental import pallas as pl
from jax.experimental.pallas import tpu as pltpu

LANES = 128
MIN_BLOCK_ROWS = 32    # multiple of 8/16/32 sublanes -> layout-clean for f32/bf16/int8
MAX_BLOCK_ROWS = 8192  # 8192 x 128 f32 = 4 MiB per block


def _round_up(x: int, m: int) -> int:
    return ((x + m - 1) // m) * m


def _exp_envelope_kernel(d_ref, o_ref):
    # Load, compute in f32, cast back on store (handles bf16 inputs on v5e).
    d = d_ref[...].astype(jnp.float32)
    lt_one = d < 1.0
    d2 = d * d
    denom = 1.0 - d2  # == (1 - d) * (1 + d) up to rounding
    # Reciprocal runs on the EUP slot (frees the VALU on v7x); any inf/NaN
    # produced for d >= 1 is discarded by the final select, so no safe-denom
    # guard is needed.
    env = jnp.exp(-d2 * pl.reciprocal(denom, approx=False))
    o_ref[...] = jnp.where(lt_one, env, 0.0).astype(o_ref.dtype)


def _envelope_jnp(d: jax.Array) -> jax.Array:
    """Plain-jnp fallback for the <128-element ragged tail."""
    x = d.astype(jnp.float32)
    x2 = x * x
    env = jnp.exp(-x2 / (1.0 - x2))
    return jnp.where(x < 1.0, env, 0.0)


def _run_kernel_2d(x2d: jax.Array) -> jax.Array:
    rows = x2d.shape[0]
    dtype = x2d.dtype
    itemsize = jnp.dtype(dtype).itemsize

    if rows < 2 * MIN_BLOCK_ROWS:
        # Tiny input: one full-extent block (always layout-legal).
        block_rows = rows
    else:
        # Guarantee >=2 grid steps so ("parallel",) splits across both v7x
        # TensorCores, while capping the block at MAX_BLOCK_ROWS.
        block_rows = min(MAX_BLOCK_ROWS, _round_up(pl.cdiv(rows, 2), MIN_BLOCK_ROWS))
    grid = (pl.cdiv(rows, block_rows),)

    # VMEM: input + output, each double-buffered, plus headroom for internal
    # scratch.  <= ~20 MiB at the largest f32 block -> fits every generation
    # (v5e/v6e 128 MiB physical, v7x 64 MiB physical).
    block_bytes = block_rows * LANES * itemsize
    vmem_limit = max(4 * block_bytes + (4 << 20), 16 << 20)

    n_elems = rows * LANES
    cost = pl.CostEstimate(
        flops=10 * n_elems,
        transcendentals=n_elems,
        bytes_accessed=2 * n_elems * itemsize,
    )

    return pl.pallas_call(
        _exp_envelope_kernel,
        out_shape=jax.ShapeDtypeStruct((rows, LANES), dtype),
        grid_spec=pltpu.PrefetchScalarGridSpec(
            num_scalar_prefetch=0,
            grid=grid,
            in_specs=[pl.BlockSpec((block_rows, LANES), lambda i: (i, 0))],
            out_specs=pl.BlockSpec((block_rows, LANES), lambda i: (i, 0)),
        ),
        compiler_params=pltpu.CompilerParams(
            dimension_semantics=("parallel",),
            vmem_limit_bytes=vmem_limit,
        ),
        cost_estimate=cost,
    )(x2d)


def exponential_envelope(d_scaled: jax.Array) -> jax.Array:
    """Pallas TPU implementation of ExponentialEnvelope.forward."""
    orig_shape = d_scaled.shape
    orig_dtype = d_scaled.dtype

    flat = d_scaled.reshape(-1)
    n = flat.shape[0]
    if n == 0:
        return jnp.zeros(orig_shape, orig_dtype)

    n_main = (n // LANES) * LANES
    tail = n - n_main

    parts = []
    if n_main > 0:
        rows = n_main // LANES
        x2d = flat[:n_main].reshape(rows, LANES)
        parts.append(_run_kernel_2d(x2d).reshape(-1))
    if tail > 0:
        # <128 ragged elements: compute directly in jnp instead of padding /
        # slicing the whole array (saves two full HBM passes on ragged sizes).
        parts.append(_envelope_jnp(flat[n_main:]).astype(orig_dtype))

    out_flat = parts[0] if len(parts) == 1 else jnp.concatenate(parts)
    return out_flat.reshape(orig_shape)


def _reference(d_scaled: jax.Array) -> jax.Array:
    # Faithful to the PyTorch module (unselected branch is discarded by where).
    d = d_scaled.astype(jnp.float32)
    env = jnp.exp(-(d ** 2) / ((1.0 - d) * (1.0 + d)))
    return jnp.where(d < 1.0, env, jnp.zeros_like(d))


if __name__ == "__main__":
    key = jax.random.PRNGKey(0)
    k1, k2, k3 = jax.random.split(key, 3)

    # Case 1: small f32 input, lane-aligned (no tail), single full-extent block.
    d1 = jax.random.uniform(k1, (2, 4, 16), jnp.float32, 0.0, 1.5)
    o1 = jax.block_until_ready(exponential_envelope(d1))
    r1 = _reference(d1)
    assert o1.shape == d1.shape and o1.dtype == d1.dtype
    assert jnp.allclose(o1, r1, atol=1e-6, rtol=1e-5), "case 1 mismatch"

    # Case 2: ragged size (tail handled in jnp) + >=2 grid steps with a
    # partial last row-block.
    d2 = jax.random.uniform(k2, (3, 700, 131), jnp.float32, 0.0, 1.5)
    o2 = jax.block_until_ready(exponential_envelope(d2))
    r2 = _reference(d2)
    assert o2.shape == d2.shape and o2.dtype == d2.dtype
    assert jnp.allclose(o2, r2, atol=1e-6, rtol=1e-5), "case 2 mismatch"

    # Case 3: bf16 input (kernel computes in f32, casts on store).
    d3 = jax.random.uniform(k3, (2, 4, 16), jnp.float32, 0.0, 1.5).astype(jnp.bfloat16)
    o3 = jax.block_until_ready(exponential_envelope(d3))
    r3 = _reference(d3).astype(jnp.bfloat16)
    assert o3.dtype == jnp.bfloat16
    assert jnp.allclose(
        o3.astype(jnp.float32), r3.astype(jnp.float32), atol=2e-2, rtol=2e-2
    ), "case 3 mismatch"

    print("KERNEL_OK")
</pallas_src>

<mosaic_0001>
module attributes {stable_mosaic.version = 11 : i64} {
  func.func @_exp_envelope_kernel(%arg0: i32, %arg1: memref<1x128xf32, #tpu.memory_space<vmem>>, %arg2: memref<1x128xf32, #tpu.memory_space<vmem>>) attributes {dimension_semantics = [#tpu.dimension_semantics<parallel>], iteration_bounds = array<i64: 1>, scalar_prefetch = 0 : i64, scratch_operands = 0 : i64, tpu.core_type = #tpu.core_type<tc>, window_params = [{transform_indices = @transform_0, window_bounds = array<i64: 1, 128>}, {transform_indices = @transform_1, window_bounds = array<i64: 1, 128>}]} {
    %c0 = arith.constant 0 : index
    %c0_0 = arith.constant 0 : index
    %0 = vector.load %arg1[%c0, %c0_0] : memref<1x128xf32, #tpu.memory_space<vmem>>, vector<1x128xf32>
    %cst = arith.constant 1.000000e+00 : f32
    %1 = vector.broadcast %cst : f32 to vector<1x128xf32>
    %2 = arith.cmpf olt, %0, %1 : vector<1x128xf32>
    %3 = arith.mulf %0, %0 : vector<1x128xf32>
    %cst_1 = arith.constant 1.000000e+00 : f32
    %4 = vector.broadcast %cst_1 : f32 to vector<1x128xf32>
    %5 = arith.subf %4, %3 : vector<1x128xf32>
    %cst_2 = arith.constant 0.000000e+00 : f32
    %6 = vector.broadcast %cst_2 : f32 to vector<1x128xf32>
    %7 = arith.subf %6, %3 : vector<1x128xf32>
    %8 = tpu.reciprocal %5 : vector<1x128xf32> -> vector<1x128xf32>
    %9 = arith.mulf %7, %8 : vector<1x128xf32>
    %10 = math.exp %9 : vector<1x128xf32>
    %cst_3 = arith.constant 0.000000e+00 : f32
    %11 = vector.broadcast %cst_3 : f32 to vector<1x128xf32>
    %12 = arith.select %2, %10, %11 : vector<1x128xi1>, vector<1x128xf32>
    %c0_4 = arith.constant 0 : index
    %c0_5 = arith.constant 0 : index
    %13 = vector.load %arg2[%c0_4, %c0_5] : memref<1x128xf32, #tpu.memory_space<vmem>>, vector<1x128xf32>
    tpu.vector_store %arg2[%c0_4, %c0_5], %12 {strides = array<i32>} : memref<1x128xf32, #tpu.memory_space<vmem>>, vector<1x128xf32>,
    return
  }
  func.func @transform_0(%arg0: i32) -> (i32, i32) {
    %c0_i32 = arith.constant 0 : i32
    %c0_i32_0 = arith.constant 0 : i32
    return %arg0, %c0_i32 : i32, i32
  }
  func.func @transform_1(%arg0: i32) -> (i32, i32) {
    %c0_i32 = arith.constant 0 : i32
    %c0_i32_0 = arith.constant 0 : i32
    return %arg0, %c0_i32 : i32, i32
  }
}

</mosaic_0001>

<llo_original>
// kernel: tpu_custom_call.1
$region0: #{tpu_custom_call.1}
  #allocation0 [shape = 'u32[]', space=smem, size = 0x4, offset = 0x4, fixed_abs, tag = 'smem constant byte address 0x4 - core index']
  #allocation1 [shape = 'u32[144,128]{1,0:T(1,128)}', space=vmem, size = 0x12000, scoped, tag = 'internal scratch']
  %s0 = inlined_call_operand.hbm [shape: f32[1,128], index: 0, kind: input, shape index: {}]
  %s1 = inlined_call_operand.hbm [shape: f32[1,128], index: 1, kind: output, shape index: {}]
  %s2 = sld [smem:[#allocation0]]
  $region18: #{tpu_custom_call.1} parent=0
    _
  %s4 = ssub.s32 1, %s2
  %s5 = scalar_select 0, %s4, %s2
  $region1: #{tpu_custom_call.1} parent=0
    #allocation2 [shape = 'u8[512]{0}', space=vmem, size = 0x400, scoped, tag = 'input window, operand 0, single buffered']
    #allocation3 [shape = 's32[1]{0}', space=sflag, size = 0x4, scoped, tag = 'scoped memory for tpu_custom_call.1']
    #allocation4 [shape = 's32[1]{0}', space=sflag, size = 0x4, scoped, tag = 'scoped memory for tpu_custom_call.1']
    #allocation5 [shape = 'u8[512]{0}', space=vmem, size = 0x400, scoped, tag = 'output window, operand 0, single buffered']
    %6 = vsyncpa [#allocation3], 0
    %7 = vsyncpa [#allocation4], 0
    // Predicated region
    $region2: #{tpu_custom_call.1} parent=1 // pred_check
      _
    $region3: #{tpu_custom_call.1} parent=1 // pred_check_branch
      %9 = sbr.rel (0) target = $region5
    $region4: #{tpu_custom_call.1} parent=1 // pred_region
      %s11 = ssub.s32 16, 16
      %12 = vsyncadd [#allocation3], %s11
      %s14 = sshll.u32 [#allocation2], 4
      %s15 = int_to_ptr.vmem [resolvable:$true] %s14
      %17 = dma.hbm_to_vmem [thread:$0]  %s0, 16, %s15, [#allocation3]
    $region5: #{tpu_custom_call.1} parent=1 // pred_fallthru
      _
    // Predicated region
    $region6: #{tpu_custom_call.1} parent=1 // pred_check
      _
    $region7: #{tpu_custom_call.1} parent=1 // pred_check_branch
      %19 = sbr.rel (0) target = $region9
    $region8: #{tpu_custom_call.1} parent=1 // pred_region
      %20 = dma.done [#allocation3], 16
    $region9: #{tpu_custom_call.1} parent=1 // pred_fallthru
      _
    %v21 = vld [vmem:[#allocation2] sm:$0x1]
    %vm22 = vcmp.lt.f32.partialorder %v21, 1.0
    %v23 = vmul.f32 %v21, %v21
    %v24 = vsub.f32 1.0, %v23
    %v25 = vsub.f32 0.0, %v23
    %v26 = vrcp.pop %v24
    %v27 = vmul.f32 %v25, %v26
    %v28 = vmul.f32 %v27, 1.442695
    %v29 = vpow.pop %v28
    %v30 = vsel %vm22, %v29, 0.0
    %31 = vst [vmem:[#allocation5] sm:$0x1] %v30
    // Predicated region
    $region10: #{tpu_custom_call.1} parent=1 // pred_check
      _
    $region11: #{tpu_custom_call.1} parent=1 // pred_check_branch
      %33 = sbr.rel (0) target = $region13
    $region12: #{tpu_custom_call.1} parent=1 // pred_region
      %s35 = ssub.s32 16, 16
      %36 = vsyncadd [#allocation4], %s35
      %s38 = sshll.u32 [#allocation5], 4
      %s39 = int_to_ptr.vmem [resolvable:$true] %s38
      %41 = dma.vmem_to_hbm [thread:$0]  %s39, 16, %s1, [#allocation4]
    $region13: #{tpu_custom_call.1} parent=1 // pred_fallthru
      _
    // Predicated region
    $region14: #{tpu_custom_call.1} parent=1 // pred_check
      _
    $region15: #{tpu_custom_call.1} parent=1 // pred_check_branch
      %43 = sbr.rel (0) target = $region17
    $region16: #{tpu_custom_call.1} parent=1 // pred_region
      %44 = dma.done [#allocation4], 16
    $region17: #{tpu_custom_call.1} parent=1 // pred_fallthru
      _
    %45 = vsyncpa [#allocation3], 1
    %46 = vsyncpa [#allocation4], 1

</llo_original>
